<compile_context>
chip_gen: v7x
topology: tpu7x:2x2x1
jax: 0.10.0
libtpu: 0.0.40
codegen_flags: <defaults>
</compile_context>

<pallas_src>
import functools

import jax
import jax.numpy as jnp
from jax.experimental import pallas as pl
from jax.experimental.pallas import tpu as pltpu

EPS = 1e-6      # vector-neuron epsilon (vn_layers.EPS)
BN_EPS = 1e-5   # torch.nn.BatchNorm2d default eps


def _vn_layer(xs, wd, cout, neg_slope, use_bn):
    """One VNLinearLeakyReLU layer.

    xs : list of 3 arrays [Cin, M]   (x/y/z vector component, channels x spatial)
    wd : [2*Cout, Cin]               (map_to_feat rows stacked over map_to_dir rows)
    Returns a list of 3 arrays [Cout, M].
    """
    ps, ds = [], []
    for xv in xs:
        pd = jnp.dot(wd, xv, preferred_element_type=jnp.float32)     # [2*Cout, M]
        ps.append(pd[:cout, :])                                      # feature p
        ds.append(pd[cout:, :])                                      # direction d

    if use_bn:
        # VNBatchNorm: BatchNorm2d (training-mode batch stats, gamma=1, beta=0)
        # applied to the per-vector L2 norm, then rescale the vectors.
        # TODO(synk): running-statistics tracking (a training-time side effect)
        # is not represented; batch statistics are used, matching .train() forward.
        norm = jnp.sqrt(ps[0] * ps[0] + ps[1] * ps[1] + ps[2] * ps[2]) + EPS   # [Cout, M]
        mean = jnp.mean(norm, axis=1, keepdims=True)                           # per channel
        var = jnp.mean((norm - mean) ** 2, axis=1, keepdims=True)
        # scale = norm_bn / norm, computed once (rsqrt + reciprocal -> EUP slot)
        scale = (norm - mean) * jax.lax.rsqrt(var + BN_EPS) \
                * pl.reciprocal(norm, approx=False)
        ps = [p * scale for p in ps]

    # VN leaky-relu: reflect the component of p in the negative half-space of d.
    dot = ps[0] * ds[0] + ps[1] * ds[1] + ps[2] * ds[2]                        # [Cout, M]
    dsq = ds[0] * ds[0] + ds[1] * ds[1] + ds[2] * ds[2]
    coef = dot * pl.reciprocal(dsq + EPS, approx=False)
    keep = dot >= 0.0
    outs = []
    for p, d in zip(ps, ds):
        p_proj = p - coef * d
        if neg_slope == 0.0:
            neg_branch = p_proj
        else:
            neg_branch = neg_slope * p + (1.0 - neg_slope) * p_proj
        outs.append(jnp.where(keep, p, neg_branch))
    return outs


def vn_conv_block_kernel(x_ref, wd1_ref, wd2_ref, o_ref, *, cmid, use_bn):
    # x_ref: [3, Cin, M]  wd1: [2*Cmid, Cin]  wd2: [2, Cmid]  o_ref: [3, M]
    xs = [x_ref[v] for v in range(3)]                                 # 3 x [Cin, M]
    hs = _vn_layer(xs, wd1_ref[...], cmid, 0.0, use_bn)               # conv1 (slope 0.0)
    outs = _vn_layer(hs, wd2_ref[...], 1, 0.2, use_bn)                # conv4 (slope 0.2)
    o_ref[...] = jnp.concatenate(outs, axis=0)                        # [3, M] lane-dense store


def vn_conv_block(x, params, batch_norm=True):
    """Pallas VNConvBlock forward. x: [B, W, 3, N, Cin] -> [B, W, 3, N, 1]."""
    B, W, V, N, Cin = x.shape
    Cmid = params["w1"].shape[0]
    M = B * W * N

    # Layout plumbing only: 3-vector leading, channels -> sublanes, spatial -> lanes.
    xk = jnp.transpose(x, (2, 4, 0, 1, 3)).reshape(V, Cin, M).astype(jnp.float32)
    # Fused feat/dir weights: one matmul per layer.
    wd1 = jnp.concatenate([params["w1"], params["d1"]], axis=0).astype(jnp.float32)  # [2*Cmid, Cin]
    wd2 = jnp.concatenate([params["w2"], params["d2"]], axis=0).astype(jnp.float32)  # [2, Cmid]

    flops = int(2 * V * M * (2 * Cmid * Cin + 2 * Cmid) + 30 * V * M * (Cmid + 1))
    transcendentals = int(4 * M * (Cmid + 1))
    bytes_accessed = int(4 * (V * Cin * M + wd1.size + wd2.size + V * M))

    kernel = functools.partial(vn_conv_block_kernel, cmid=Cmid, use_bn=batch_norm)
    vmem = pl.BlockSpec(memory_space=pltpu.MemorySpace.VMEM)
    out = pl.pallas_call(
        kernel,
        out_shape=jax.ShapeDtypeStruct((V, M), jnp.float32),
        in_specs=[vmem, vmem, vmem],
        out_specs=vmem,
        cost_estimate=pl.CostEstimate(flops=flops,
                                      transcendentals=transcendentals,
                                      bytes_accessed=bytes_accessed),
    )(xk, wd1, wd2)

    # TODO(synk): if B or N*W grow past VMEM (esp. v7x: 64 MiB, 2 TCs), split BN
    # into a stats pass + apply pass so a parallel grid over B can be added.
    out = out.reshape(V, B, W, N)
    return jnp.transpose(out, (1, 2, 0, 3))[..., None]                # -> [B, W, 3, N, 1]


def vn_conv_block_ref(x, params, batch_norm=True):
    """Plain-JAX reference mirroring the PyTorch forward (for verification)."""
    x1 = jnp.swapaxes(x, 1, -1)                  # [B, Cin, 3, N, W]

    def layer(x, w, dw, neg):
        p = jnp.einsum("bivnw,oi->bovnw", x, w)
        d = jnp.einsum("bivnw,oi->bovnw", x, dw)
        if batch_norm:
            norm = jnp.sqrt(jnp.sum(p * p, axis=2)) + EPS          # [B,C,N,W]
            mean = jnp.mean(norm, axis=(0, 2, 3), keepdims=True)
            var = jnp.mean((norm - mean) ** 2, axis=(0, 2, 3), keepdims=True)
            norm_bn = (norm - mean) / jnp.sqrt(var + BN_EPS)
            p = p / norm[:, :, None] * norm_bn[:, :, None]
        dot = jnp.sum(p * d, axis=2, keepdims=True)
        mask = jnp.where(dot >= 0.0, 1.0, 0.0)
        dsq = jnp.sum(d * d, axis=2, keepdims=True)
        proj = p - (dot / (dsq + EPS)) * d
        return neg * p + (1.0 - neg) * (mask * p + (1.0 - mask) * proj)

    h = layer(x1, params["w1"], params["d1"], 0.0)
    o = layer(h, params["w2"], params["d2"], 0.2)
    return jnp.swapaxes(o, 1, -1)                # [B, W, 3, N, 1]


if __name__ == "__main__":
    # Small shapes consistent with the module: input_filters=4, nb_units=8.
    B, W, N = 2, 8, 16          # batch, trailing spatial, sequence length
    Cin, Cmid = 4, 8            # input_filters, nb_units
    batch_norm = True

    key = jax.random.PRNGKey(0)
    kx, k1, k2, k3, k4 = jax.random.split(key, 5)
    x = jax.random.normal(kx, (B, W, 3, N, Cin), dtype=jnp.float32)

    # nn.Linear(in, out, bias=False) weights, deterministic uniform init.
    def init(k, out_f, in_f):
        bound = 1.0 / jnp.sqrt(jnp.float32(in_f))
        return jax.random.uniform(k, (out_f, in_f), jnp.float32, -bound, bound)

    params = {
        "w1": init(k1, Cmid, Cin),   # conv1.map_to_feat
        "d1": init(k2, Cmid, Cin),   # conv1.map_to_dir
        "w2": init(k3, 1, Cmid),     # conv4.map_to_feat
        "d2": init(k4, 1, Cmid),     # conv4.map_to_dir
    }

    out = vn_conv_block(x, params, batch_norm=batch_norm)
    out = jax.block_until_ready(out)

    ref = vn_conv_block_ref(x, params, batch_norm=batch_norm)
    assert out.shape == (B, W, 3, N, 1), out.shape
    assert jnp.allclose(out, ref, rtol=1e-4, atol=1e-5), float(jnp.max(jnp.abs(out - ref)))

    print("KERNEL_OK")
</pallas_src>

<mosaic_0001>
module attributes {stable_mosaic.version = 11 : i64} {
  func.func @vn_conv_block_kernel(%arg0: memref<3x4x256xf32, #tpu.memory_space<vmem>>, %arg1: memref<16x4xf32, #tpu.memory_space<vmem>>, %arg2: memref<2x8xf32, #tpu.memory_space<vmem>>, %arg3: memref<3x256xf32, #tpu.memory_space<vmem>>) attributes {dimension_semantics = [], scalar_prefetch = 0 : i64, scratch_operands = 0 : i64, tpu.core_type = #tpu.core_type<tc>} {
    %c0 = arith.constant 0 : index
    %c0_0 = arith.constant 0 : index
    %c0_1 = arith.constant 0 : index
    %0 = vector.load %arg0[%c0, %c0_0, %c0_1] : memref<3x4x256xf32, #tpu.memory_space<vmem>>, vector<1x4x256xf32>
    %1 = vector.shape_cast %0 : vector<1x4x256xf32> to vector<4x256xf32>
    %c1 = arith.constant 1 : index
    %c0_2 = arith.constant 0 : index
    %c0_3 = arith.constant 0 : index
    %2 = vector.load %arg0[%c1, %c0_2, %c0_3] : memref<3x4x256xf32, #tpu.memory_space<vmem>>, vector<1x4x256xf32>
    %3 = vector.shape_cast %2 : vector<1x4x256xf32> to vector<4x256xf32>
    %c2 = arith.constant 2 : index
    %c0_4 = arith.constant 0 : index
    %c0_5 = arith.constant 0 : index
    %4 = vector.load %arg0[%c2, %c0_4, %c0_5] : memref<3x4x256xf32, #tpu.memory_space<vmem>>, vector<1x4x256xf32>
    %5 = vector.shape_cast %4 : vector<1x4x256xf32> to vector<4x256xf32>
    %c0_6 = arith.constant 0 : index
    %c0_7 = arith.constant 0 : index
    %6 = vector.load %arg1[%c0_6, %c0_7] : memref<16x4xf32, #tpu.memory_space<vmem>>, vector<16x4xf32>
    %cst = arith.constant dense<0.000000e+00> : vector<16x256xf32>
    %7 = tpu.matmul %6, %1, %cst {dimension_numbers = #tpu.dot_dimension_numbers<[1], [0], [0], [1], [0, 0, 1, 1], [], []>} : vector<16x4xf32>, vector<4x256xf32>, vector<16x256xf32> -> vector<16x256xf32>
    %8 = vector.extract_strided_slice %7 {offsets = [0, 0], sizes = [8, 256], strides = [1, 1]} : vector<16x256xf32> to vector<8x256xf32>
    %9 = vector.extract_strided_slice %7 {offsets = [8, 0], sizes = [8, 256], strides = [1, 1]} : vector<16x256xf32> to vector<8x256xf32>
    %cst_8 = arith.constant dense<0.000000e+00> : vector<16x256xf32>
    %10 = tpu.matmul %6, %3, %cst_8 {dimension_numbers = #tpu.dot_dimension_numbers<[1], [0], [0], [1], [0, 0, 1, 1], [], []>} : vector<16x4xf32>, vector<4x256xf32>, vector<16x256xf32> -> vector<16x256xf32>
    %11 = vector.extract_strided_slice %10 {offsets = [0, 0], sizes = [8, 256], strides = [1, 1]} : vector<16x256xf32> to vector<8x256xf32>
    %12 = vector.extract_strided_slice %10 {offsets = [8, 0], sizes = [8, 256], strides = [1, 1]} : vector<16x256xf32> to vector<8x256xf32>
    %cst_9 = arith.constant dense<0.000000e+00> : vector<16x256xf32>
    %13 = tpu.matmul %6, %5, %cst_9 {dimension_numbers = #tpu.dot_dimension_numbers<[1], [0], [0], [1], [0, 0, 1, 1], [], []>} : vector<16x4xf32>, vector<4x256xf32>, vector<16x256xf32> -> vector<16x256xf32>
    %14 = vector.extract_strided_slice %13 {offsets = [0, 0], sizes = [8, 256], strides = [1, 1]} : vector<16x256xf32> to vector<8x256xf32>
    %15 = vector.extract_strided_slice %13 {offsets = [8, 0], sizes = [8, 256], strides = [1, 1]} : vector<16x256xf32> to vector<8x256xf32>
    %16 = arith.mulf %8, %8 : vector<8x256xf32>
    %17 = arith.mulf %11, %11 : vector<8x256xf32>
    %18 = arith.addf %16, %17 : vector<8x256xf32>
    %19 = arith.mulf %14, %14 : vector<8x256xf32>
    %20 = arith.addf %18, %19 : vector<8x256xf32>
    %21 = math.sqrt %20 : vector<8x256xf32>
    %cst_10 = arith.constant 9.99999997E-7 : f32
    %22 = vector.broadcast %cst_10 : f32 to vector<8x256xf32>
    %23 = arith.addf %21, %22 : vector<8x256xf32>
    %cst_11 = arith.constant dense<0.000000e+00> : vector<8xf32>
    %24 = vector.multi_reduction <add>, %23, %cst_11 [1] : vector<8x256xf32> to vector<8xf32>
    %25 = vector.shape_cast %24 : vector<8xf32> to vector<8x1xf32>
    %cst_12 = arith.constant 2.560000e+02 : f32
    %26 = vector.broadcast %cst_12 : f32 to vector<8x1xf32>
    %27 = arith.divf %25, %26 : vector<8x1xf32>
    %28 = vector.broadcast %27 : vector<8x1xf32> to vector<8x256xf32>
    %29 = arith.subf %23, %28 : vector<8x256xf32>
    %30 = arith.mulf %29, %29 : vector<8x256xf32>
    %cst_13 = arith.constant dense<0.000000e+00> : vector<8xf32>
    %31 = vector.multi_reduction <add>, %30, %cst_13 [1] : vector<8x256xf32> to vector<8xf32>
    %32 = vector.shape_cast %31 : vector<8xf32> to vector<8x1xf32>
    %cst_14 = arith.constant 2.560000e+02 : f32
    %33 = vector.broadcast %cst_14 : f32 to vector<8x1xf32>
    %34 = arith.divf %32, %33 : vector<8x1xf32>
    %35 = vector.broadcast %27 : vector<8x1xf32> to vector<8x256xf32>
    %36 = arith.subf %23, %35 : vector<8x256xf32>
    %cst_15 = arith.constant 9.99999974E-6 : f32
    %37 = vector.broadcast %cst_15 : f32 to vector<8x1xf32>
    %38 = arith.addf %34, %37 : vector<8x1xf32>
    %39 = math.rsqrt %38 : vector<8x1xf32>
    %40 = vector.broadcast %39 : vector<8x1xf32> to vector<8x256xf32>
    %41 = arith.mulf %36, %40 : vector<8x256xf32>
    %42 = tpu.reciprocal %23 : vector<8x256xf32> -> vector<8x256xf32>
    %43 = arith.mulf %41, %42 : vector<8x256xf32>
    %44 = arith.mulf %8, %43 : vector<8x256xf32>
    %45 = arith.mulf %11, %43 : vector<8x256xf32>
    %46 = arith.mulf %14, %43 : vector<8x256xf32>
    %47 = arith.mulf %44, %9 : vector<8x256xf32>
    %48 = arith.mulf %45, %12 : vector<8x256xf32>
    %49 = arith.addf %47, %48 : vector<8x256xf32>
    %50 = arith.mulf %46, %15 : vector<8x256xf32>
    %51 = arith.addf %49, %50 : vector<8x256xf32>
    %52 = arith.mulf %9, %9 : vector<8x256xf32>
    %53 = arith.mulf %12, %12 : vector<8x256xf32>
    %54 = arith.addf %52, %53 : vector<8x256xf32>
    %55 = arith.mulf %15, %15 : vector<8x256xf32>
    %56 = arith.addf %54, %55 : vector<8x256xf32>
    %cst_16 = arith.constant 9.99999997E-7 : f32
    %57 = vector.broadcast %cst_16 : f32 to vector<8x256xf32>
    %58 = arith.addf %56, %57 : vector<8x256xf32>
    %59 = tpu.reciprocal %58 : vector<8x256xf32> -> vector<8x256xf32>
    %60 = arith.mulf %51, %59 : vector<8x256xf32>
    %cst_17 = arith.constant 0.000000e+00 : f32
    %61 = vector.broadcast %cst_17 : f32 to vector<8x256xf32>
    %62 = arith.cmpf oge, %51, %61 : vector<8x256xf32>
    %63 = arith.mulf %60, %9 : vector<8x256xf32>
    %64 = arith.subf %44, %63 : vector<8x256xf32>
    %65 = arith.select %62, %44, %64 : vector<8x256xi1>, vector<8x256xf32>
    %66 = arith.mulf %60, %12 : vector<8x256xf32>
    %67 = arith.subf %45, %66 : vector<8x256xf32>
    %68 = arith.select %62, %45, %67 : vector<8x256xi1>, vector<8x256xf32>
    %69 = arith.mulf %60, %15 : vector<8x256xf32>
    %70 = arith.subf %46, %69 : vector<8x256xf32>
    %71 = arith.select %62, %46, %70 : vector<8x256xi1>, vector<8x256xf32>
    %c0_18 = arith.constant 0 : index
    %c0_19 = arith.constant 0 : index
    %72 = vector.load %arg2[%c0_18, %c0_19] : memref<2x8xf32, #tpu.memory_space<vmem>>, vector<2x8xf32>
    %cst_20 = arith.constant dense<0.000000e+00> : vector<2x256xf32>
    %73 = tpu.matmul %72, %65, %cst_20 {dimension_numbers = #tpu.dot_dimension_numbers<[1], [0], [0], [1], [0, 0, 1, 1], [], []>} : vector<2x8xf32>, vector<8x256xf32>, vector<2x256xf32> -> vector<2x256xf32>
    %74 = vector.extract_strided_slice %73 {offsets = [0, 0], sizes = [1, 256], strides = [1, 1]} : vector<2x256xf32> to vector<1x256xf32>
    %75 = vector.extract_strided_slice %73 {offsets = [1, 0], sizes = [1, 256], strides = [1, 1]} : vector<2x256xf32> to vector<1x256xf32>
    %cst_21 = arith.constant dense<0.000000e+00> : vector<2x256xf32>
    %76 = tpu.matmul %72, %68, %cst_21 {dimension_numbers = #tpu.dot_dimension_numbers<[1], [0], [0], [1], [0, 0, 1, 1], [], []>} : vector<2x8xf32>, vector<8x256xf32>, vector<2x256xf32> -> vector<2x256xf32>
    %77 = vector.extract_strided_slice %76 {offsets = [0, 0], sizes = [1, 256], strides = [1, 1]} : vector<2x256xf32> to vector<1x256xf32>
    %78 = vector.extract_strided_slice %76 {offsets = [1, 0], sizes = [1, 256], strides = [1, 1]} : vector<2x256xf32> to vector<1x256xf32>
    %cst_22 = arith.constant dense<0.000000e+00> : vector<2x256xf32>
    %79 = tpu.matmul %72, %71, %cst_22 {dimension_numbers = #tpu.dot_dimension_numbers<[1], [0], [0], [1], [0, 0, 1, 1], [], []>} : vector<2x8xf32>, vector<8x256xf32>, vector<2x256xf32> -> vector<2x256xf32>
    %80 = vector.extract_strided_slice %79 {offsets = [0, 0], sizes = [1, 256], strides = [1, 1]} : vector<2x256xf32> to vector<1x256xf32>
    %81 = vector.extract_strided_slice %79 {offsets = [1, 0], sizes = [1, 256], strides = [1, 1]} : vector<2x256xf32> to vector<1x256xf32>
    %82 = arith.mulf %74, %74 : vector<1x256xf32>
    %83 = arith.mulf %77, %77 : vector<1x256xf32>
    %84 = arith.addf %82, %83 : vector<1x256xf32>
    %85 = arith.mulf %80, %80 : vector<1x256xf32>
    %86 = arith.addf %84, %85 : vector<1x256xf32>
    %87 = math.sqrt %86 : vector<1x256xf32>
    %cst_23 = arith.constant 9.99999997E-7 : f32
    %88 = vector.broadcast %cst_23 : f32 to vector<1x256xf32>
    %89 = arith.addf %87, %88 : vector<1x256xf32>
    %cst_24 = arith.constant dense<0.000000e+00> : vector<1xf32>
    %90 = vector.multi_reduction <add>, %89, %cst_24 [1] : vector<1x256xf32> to vector<1xf32>
    %91 = vector.shape_cast %90 : vector<1xf32> to vector<1x1xf32>
    %cst_25 = arith.constant 2.560000e+02 : f32
    %92 = vector.broadcast %cst_25 : f32 to vector<1x1xf32>
    %93 = arith.divf %91, %92 : vector<1x1xf32>
    %94 = vector.broadcast %93 : vector<1x1xf32> to vector<1x256xf32>
    %95 = arith.subf %89, %94 : vector<1x256xf32>
    %96 = arith.mulf %95, %95 : vector<1x256xf32>
    %cst_26 = arith.constant dense<0.000000e+00> : vector<1xf32>
    %97 = vector.multi_reduction <add>, %96, %cst_26 [1] : vector<1x256xf32> to vector<1xf32>
    %98 = vector.shape_cast %97 : vector<1xf32> to vector<1x1xf32>
    %cst_27 = arith.constant 2.560000e+02 : f32
    %99 = vector.broadcast %cst_27 : f32 to vector<1x1xf32>
    %100 = arith.divf %98, %99 : vector<1x1xf32>
    %101 = vector.broadcast %93 : vector<1x1xf32> to vector<1x256xf32>
    %102 = arith.subf %89, %101 : vector<1x256xf32>
    %cst_28 = arith.constant 9.99999974E-6 : f32
    %103 = vector.broadcast %cst_28 : f32 to vector<1x1xf32>
    %104 = arith.addf %100, %103 : vector<1x1xf32>
    %105 = math.rsqrt %104 : vector<1x1xf32>
    %106 = vector.broadcast %105 : vector<1x1xf32> to vector<1x256xf32>
    %107 = arith.mulf %102, %106 : vector<1x256xf32>
    %108 = tpu.reciprocal %89 : vector<1x256xf32> -> vector<1x256xf32>
    %109 = arith.mulf %107, %108 : vector<1x256xf32>
    %110 = arith.mulf %74, %109 : vector<1x256xf32>
    %111 = arith.mulf %77, %109 : vector<1x256xf32>
    %112 = arith.mulf %80, %109 : vector<1x256xf32>
    %113 = arith.mulf %110, %75 : vector<1x256xf32>
    %114 = arith.mulf %111, %78 : vector<1x256xf32>
    %115 = arith.addf %113, %114 : vector<1x256xf32>
    %116 = arith.mulf %112, %81 : vector<1x256xf32>
    %117 = arith.addf %115, %116 : vector<1x256xf32>
    %118 = arith.mulf %75, %75 : vector<1x256xf32>
    %119 = arith.mulf %78, %78 : vector<1x256xf32>
    %120 = arith.addf %118, %119 : vector<1x256xf32>
    %121 = arith.mulf %81, %81 : vector<1x256xf32>
    %122 = arith.addf %120, %121 : vector<1x256xf32>
    %cst_29 = arith.constant 9.99999997E-7 : f32
    %123 = vector.broadcast %cst_29 : f32 to vector<1x256xf32>
    %124 = arith.addf %122, %123 : vector<1x256xf32>
    %125 = tpu.reciprocal %124 : vector<1x256xf32> -> vector<1x256xf32>
    %126 = arith.mulf %117, %125 : vector<1x256xf32>
    %cst_30 = arith.constant 0.000000e+00 : f32
    %127 = vector.broadcast %cst_30 : f32 to vector<1x256xf32>
    %128 = arith.cmpf oge, %117, %127 : vector<1x256xf32>
    %129 = arith.mulf %126, %75 : vector<1x256xf32>
    %130 = arith.subf %110, %129 : vector<1x256xf32>
    %cst_31 = arith.constant 2.000000e-01 : f32
    %131 = vector.broadcast %cst_31 : f32 to vector<1x256xf32>
    %132 = arith.mulf %131, %110 : vector<1x256xf32>
    %cst_32 = arith.constant 8.000000e-01 : f32
    %133 = vector.broadcast %cst_32 : f32 to vector<1x256xf32>
    %134 = arith.mulf %133, %130 : vector<1x256xf32>
    %135 = arith.addf %132, %134 : vector<1x256xf32>
    %136 = arith.select %128, %110, %135 : vector<1x256xi1>, vector<1x256xf32>
    %137 = arith.mulf %126, %78 : vector<1x256xf32>
    %138 = arith.subf %111, %137 : vector<1x256xf32>
    %cst_33 = arith.constant 2.000000e-01 : f32
    %139 = vector.broadcast %cst_33 : f32 to vector<1x256xf32>
    %140 = arith.mulf %139, %111 : vector<1x256xf32>
    %cst_34 = arith.constant 8.000000e-01 : f32
    %141 = vector.broadcast %cst_34 : f32 to vector<1x256xf32>
    %142 = arith.mulf %141, %138 : vector<1x256xf32>
    %143 = arith.addf %140, %142 : vector<1x256xf32>
    %144 = arith.select %128, %111, %143 : vector<1x256xi1>, vector<1x256xf32>
    %145 = arith.mulf %126, %81 : vector<1x256xf32>
    %146 = arith.subf %112, %145 : vector<1x256xf32>
    %cst_35 = arith.constant 2.000000e-01 : f32
    %147 = vector.broadcast %cst_35 : f32 to vector<1x256xf32>
    %148 = arith.mulf %147, %112 : vector<1x256xf32>
    %cst_36 = arith.constant 8.000000e-01 : f32
    %149 = vector.broadcast %cst_36 : f32 to vector<1x256xf32>
    %150 = arith.mulf %149, %146 : vector<1x256xf32>
    %151 = arith.addf %148, %150 : vector<1x256xf32>
    %152 = arith.select %128, %112, %151 : vector<1x256xi1>, vector<1x256xf32>
    %153 = tpu.concatenate %136, %144, %152 in 0 : vector<1x256xf32>, vector<1x256xf32>, vector<1x256xf32> -> vector<3x256xf32>
    %c0_37 = arith.constant 0 : index
    %c0_38 = arith.constant 0 : index
    %154 = vector.load %arg3[%c0_37, %c0_38] : memref<3x256xf32, #tpu.memory_space<vmem>>, vector<3x256xf32>
    tpu.vector_store %arg3[%c0_37, %c0_38], %153 {strides = array<i32>} : memref<3x256xf32, #tpu.memory_space<vmem>>, vector<3x256xf32>,
    return
  }
}

</mosaic_0001>

<llo_original>
// kernel: tpu_custom_call.1
$region0: #{tpu_custom_call.1}
  #allocation0 [shape = 'u32[]', space=smem, size = 0x4, offset = 0x4, fixed_abs, tag = 'smem constant byte address 0x4 - core index']
  #allocation1 [shape = 'u32[144,128]{1,0:T(1,128)}', space=vmem, size = 0x12000, scoped, tag = 'internal scratch']
  %s0 = inlined_call_operand.hbm [shape: f32[3,4,256], index: 0, kind: input, shape index: {}]
  %s1 = inlined_call_operand.vmem [shape: f32[16,4], index: 1, kind: input, shape index: {}]
  %s2 = inlined_call_operand.vmem [shape: f32[2,8], index: 2, kind: input, shape index: {}]
  %s3 = inlined_call_operand.hbm [shape: f32[3,256], index: 3, kind: output, shape index: {}]
  %s4 = sld [smem:[#allocation0]]
  $region26: #{tpu_custom_call.1} parent=0
    _
  %s6 = ssub.s32 1, %s4
  %s7 = scalar_select 0, %s6, %s4
  $region1: #{tpu_custom_call.1} parent=0
    #allocation2 [shape = 'u8[12288]{0}', space=vmem, size = 0x3000, scoped, tag = 'input window, operand 0, single buffered']
    #allocation3 [shape = 's32[1]{0}', space=sflag, size = 0x4, scoped, tag = 'scoped memory for tpu_custom_call.1']
    #allocation4 [shape = 's32[1]{0}', space=sflag, size = 0x4, scoped, tag = 'scoped memory for tpu_custom_call.1']
    #allocation5 [shape = 'u8[4096]{0}', space=vmem, size = 0x1000, scoped, tag = 'output window, operand 0, single buffered']
    %8 = vsyncpa [#allocation3], 0
    %9 = vsyncpa [#allocation4], 0
    // Predicated region
    $region2: #{tpu_custom_call.1} parent=1 // pred_check
      _
    $region3: #{tpu_custom_call.1} parent=1 // pred_check_branch
      %11 = sbr.rel (0) target = $region5
    $region4: #{tpu_custom_call.1} parent=1 // pred_region
      %s13 = ssub.s32 384, 384
      %14 = vsyncadd [#allocation3], %s13
      %s15 = sshll.u32 [#allocation2], 4
      %s16 = int_to_ptr.vmem [resolvable:$true] %s15
      %21 = dma.hbm_to_vmem [thread:$0]  %s0, 384, %s16, [#allocation3], 128, 128, 8
    $region5: #{tpu_custom_call.1} parent=1 // pred_fallthru
      _
    // Predicated region
    $region6: #{tpu_custom_call.1} parent=1 // pred_check
      _
    $region7: #{tpu_custom_call.1} parent=1 // pred_check_branch
      %23 = sbr.rel (0) target = $region9
    $region8: #{tpu_custom_call.1} parent=1 // pred_region
      _
    $region9: #{tpu_custom_call.1} parent=1 // pred_fallthru
      _
    // Predicated region
    $region10: #{tpu_custom_call.1} parent=1 // pred_check
      _
    $region11: #{tpu_custom_call.1} parent=1 // pred_check_branch
      %25 = sbr.rel (0) target = $region13
    $region12: #{tpu_custom_call.1} parent=1 // pred_region
      _
    $region13: #{tpu_custom_call.1} parent=1 // pred_fallthru
      _
    // Predicated region
    $region14: #{tpu_custom_call.1} parent=1 // pred_check
      _
    $region15: #{tpu_custom_call.1} parent=1 // pred_check_branch
      %27 = sbr.rel (0) target = $region17
    $region16: #{tpu_custom_call.1} parent=1 // pred_region
      %28 = dma.done [#allocation3], 384
    $region17: #{tpu_custom_call.1} parent=1 // pred_fallthru
      _
    %v29 = vld [vmem:[#allocation2] sm:$0xff]
    %s30 = scalar_lea.vmem [#allocation2], 8
    %v31 = vld [vmem:[%s30] sm:$0xff]
    %s32 = scalar_lea.vmem [#allocation2], 16
    %v33 = vld [vmem:[%s32] sm:$0xff]
    %v34 = vld [vmem:[%s1] sm:$0xff]
    %v35 = vld [vmem:[%s1 + $0x8] sm:$0xff]
    %v37 = vcombine.high %v29, %v29
    %vm38 = vcmask 31744
    %v40 = vsel %vm38, %v34, 0
    %v43 = vsel %vm38, %v35, 0
    %vm45 = vcmask 1043456
    %v46 = vsel %vm45, %v29, 0
    %v48 = vsel %vm45, %v37, 0
    %50 = vmatprep.subr.mxu0 %v48
    %51 = vmatpush1.msra.mxu0 %v46
    %52 = vmatprep.subr.mxu0 0.0
    %53 = vmatpush1.msra.mxu0 0.0
    %54 = vmatprep.subr.mxu0 0.0
    %55 = vmatpush1.msra.mxu0 0.0
    %56 = vmatprep.subr.mxu0 0.0
    %57 = vmatpush1.msra.mxu0 0.0
    %58 = vmatprep.subr.mxu0 0.0
    %59 = vmatpush1.msra.mxu0 0.0
    %60 = vmatprep.subr.mxu0 0.0
    %61 = vmatpush1.msra.mxu0 0.0
    %62 = vmatprep.subr.mxu0 0.0
    %63 = vmatpush1.msra.mxu0 0.0
    %64 = vmatprep.subr.mxu0 0.0
    %65 = vmatpush1.msra.mxu0 0.0
    %66 = vmatprep.subr.mxu0 0.0
    %67 = vmatpush1.msra.mxu0 0.0
    %68 = vmatprep.subr.mxu0 0.0
    %69 = vmatpush1.msra.mxu0 0.0
    %70 = vmatprep.subr.mxu0 0.0
    %71 = vmatpush1.msra.mxu0 0.0
    %72 = vmatprep.subr.mxu0 0.0
    %73 = vmatpush1.msra.mxu0 0.0
    %74 = vmatprep.subr.mxu0 0.0
    %75 = vmatpush1.msra.mxu0 0.0
    %76 = vmatprep.subr.mxu0 0.0
    %77 = vmatpush1.msra.mxu0 0.0
    %78 = vmatprep.subr.mxu0 0.0
    %79 = vmatpush1.msra.mxu0 0.0
    %80 = vmatprep.subr.mxu0 0.0
    %81 = vmatpush1.msra.mxu0 0.0
    %82 = vmatprep.subr.mxu0 0.0
    %83 = vmatpush1.msra.mxu0 0.0
    %84 = vmatprep.subr.mxu0 0.0
    %85 = vmatpush1.msra.mxu0 0.0
    %86 = vmatprep.subr.mxu0 0.0
    %87 = vmatpush1.msra.mxu0 0.0
    %88 = vmatprep.subr.mxu0 0.0
    %89 = vmatpush1.msra.mxu0 0.0
    %90 = vmatprep.subr.mxu0 0.0
    %91 = vmatpush1.msra.mxu0 0.0
    %92 = vmatprep.subr.mxu0 0.0
    %93 = vmatpush1.msra.mxu0 0.0
    %94 = vmatprep.subr.mxu0 0.0
    %95 = vmatpush1.msra.mxu0 0.0
    %96 = vmatprep.subr.mxu0 0.0
    %97 = vmatpush1.msra.mxu0 0.0
    %98 = vmatprep.subr.mxu0 0.0
    %99 = vmatpush1.msra.mxu0 0.0
    %100 = vmatprep.subr.mxu0 0.0
    %101 = vmatpush1.msra.mxu0 0.0
    %102 = vmatprep.subr.mxu0 0.0
    %103 = vmatpush1.msra.mxu0 0.0
    %104 = vmatprep.subr.mxu0 0.0
    %105 = vmatpush1.msra.mxu0 0.0
    %106 = vmatprep.subr.mxu0 0.0
    %107 = vmatpush1.msra.mxu0 0.0
    %108 = vmatprep.subr.mxu0 0.0
    %109 = vmatpush1.msra.mxu0 0.0
    %110 = vmatprep.subr.mxu0 0.0
    %111 = vmatpush1.msra.mxu0 0.0
    %112 = vmatprep.subr.mxu0 0.0
    %113 = vmatpush1.msra.mxu0 0.0
    %114 = vmatprep.mubr.f32.mxu0 0.0
    %115 = vmatmul.mubr.f32.gmra.mrb[0].mxu0 %v40
    %v116 = vpop.f32.mrb[0].mxu0
    %v117 = vadd.f32 0.0, %v116
    %v118 = vpop.f32.mrb[0].mxu0
    %v119 = vadd.f32 0.0, %v118
    %120 = vmatprep.mubr.f32.mxu0 0.0
    %121 = vmatmul.mubr.f32.gmra.mrb[0].mxu0 %v43
    %v122 = vpop.f32.mrb[0].mxu0
    %v123 = vadd.f32 0.0, %v122
    %v124 = vpop.f32.mrb[0].mxu0
    %v125 = vadd.f32 0.0, %v124
    %126 = vdwg.mxu0
    %v128 = vcombine.high %v31, %v31
    %v129 = vsel %vm45, %v31, 0
    %v131 = vsel %vm45, %v128, 0
    %133 = vmatprep.subr.mxu0 %v131
    %134 = vmatpush1.msra.mxu0 %v129
    %135 = vmatprep.subr.mxu0 0.0
    %136 = vmatpush1.msra.mxu0 0.0
    %137 = vmatprep.subr.mxu0 0.0
    %138 = vmatpush1.msra.mxu0 0.0
    %139 = vmatprep.subr.mxu0 0.0
    %140 = vmatpush1.msra.mxu0 0.0
    %141 = vmatprep.subr.mxu0 0.0
    %142 = vmatpush1.msra.mxu0 0.0
    %143 = vmatprep.subr.mxu0 0.0
    %144 = vmatpush1.msra.mxu0 0.0
    %145 = vmatprep.subr.mxu0 0.0
    %146 = vmatpush1.msra.mxu0 0.0
    %147 = vmatprep.subr.mxu0 0.0
    %148 = vmatpush1.msra.mxu0 0.0
    %149 = vmatprep.subr.mxu0 0.0
    %150 = vmatpush1.msra.mxu0 0.0
    %151 = vmatprep.subr.mxu0 0.0
    %152 = vmatpush1.msra.mxu0 0.0
    %153 = vmatprep.subr.mxu0 0.0
    %154 = vmatpush1.msra.mxu0 0.0
    %155 = vmatprep.subr.mxu0 0.0
    %156 = vmatpush1.msra.mxu0 0.0
    %157 = vmatprep.subr.mxu0 0.0
    %158 = vmatpush1.msra.mxu0 0.0
    %159 = vmatprep.subr.mxu0 0.0
    %160 = vmatpush1.msra.mxu0 0.0
    %161 = vmatprep.subr.mxu0 0.0
    %162 = vmatpush1.msra.mxu0 0.0
    %163 = vmatprep.subr.mxu0 0.0
    %164 = vmatpush1.msra.mxu0 0.0
    %165 = vmatprep.subr.mxu0 0.0
    %166 = vmatpush1.msra.mxu0 0.0
    %167 = vmatprep.subr.mxu0 0.0
    %168 = vmatpush1.msra.mxu0 0.0
    %169 = vmatprep.subr.mxu0 0.0
    %170 = vmatpush1.msra.mxu0 0.0
    %171 = vmatprep.subr.mxu0 0.0
    %172 = vmatpush1.msra.mxu0 0.0
    %173 = vmatprep.subr.mxu0 0.0
    %174 = vmatpush1.msra.mxu0 0.0
    %175 = vmatprep.subr.mxu0 0.0
    %176 = vmatpush1.msra.mxu0 0.0
    %177 = vmatprep.subr.mxu0 0.0
    %178 = vmatpush1.msra.mxu0 0.0
    %179 = vmatprep.subr.mxu0 0.0
    %180 = vmatpush1.msra.mxu0 0.0
    %181 = vmatprep.subr.mxu0 0.0
    %182 = vmatpush1.msra.mxu0 0.0
    %183 = vmatprep.subr.mxu0 0.0
    %184 = vmatpush1.msra.mxu0 0.0
    %185 = vmatprep.subr.mxu0 0.0
    %186 = vmatpush1.msra.mxu0 0.0
    %187 = vmatprep.subr.mxu0 0.0
    %188 = vmatpush1.msra.mxu0 0.0
    %189 = vmatprep.subr.mxu0 0.0
    %190 = vmatpush1.msra.mxu0 0.0
    %191 = vmatprep.subr.mxu0 0.0
    %192 = vmatpush1.msra.mxu0 0.0
    %193 = vmatprep.subr.mxu0 0.0
    %194 = vmatpush1.msra.mxu0 0.0
    %195 = vmatprep.subr.mxu0 0.0
    %196 = vmatpush1.msra.mxu0 0.0
    %197 = vmatprep.mubr.f32.mxu0 0.0
    %198 = vmatmul.mubr.f32.gmra.mrb[0].mxu0 %v40
    %v199 = vpop.f32.mrb[0].mxu0
    %v200 = vadd.f32 0.0, %v199
    %v201 = vpop.f32.mrb[0].mxu0
    %v202 = vadd.f32 0.0, %v201
    %203 = vmatprep.mubr.f32.mxu0 0.0
    %204 = vmatmul.mubr.f32.gmra.mrb[0].mxu0 %v43
    %v205 = vpop.f32.mrb[0].mxu0
    %v206 = vadd.f32 0.0, %v205
    %v207 = vpop.f32.mrb[0].mxu0
    %v208 = vadd.f32 0.0, %v207
    %209 = vdwg.mxu0
    %v211 = vcombine.high %v33, %v33
    %v212 = vsel %vm45, %v33, 0
    %v214 = vsel %vm45, %v211, 0
    %216 = vmatprep.subr.mxu0 %v214
    %217 = vmatpush1.msra.mxu0 %v212
    %218 = vmatprep.subr.mxu0 0.0
    %219 = vmatpush1.msra.mxu0 0.0
    %220 = vmatprep.subr.mxu0 0.0
    %221 = vmatpush1.msra.mxu0 0.0
    %222 = vmatprep.subr.mxu0 0.0
    %223 = vmatpush1.msra.mxu0 0.0
    %224 = vmatprep.subr.mxu0 0.0
    %225 = vmatpush1.msra.mxu0 0.0
    %226 = vmatprep.subr.mxu0 0.0
    %227 = vmatpush1.msra.mxu0 0.0
    %228 = vmatprep.subr.mxu0 0.0
    %229 = vmatpush1.msra.mxu0 0.0
    %230 = vmatprep.subr.mxu0 0.0
    %231 = vmatpush1.msra.mxu0 0.0
    %232 = vmatprep.subr.mxu0 0.0
    %233 = vmatpush1.msra.mxu0 0.0
    %234 = vmatprep.subr.mxu0 0.0
    %235 = vmatpush1.msra.mxu0 0.0
    %236 = vmatprep.subr.mxu0 0.0
    %237 = vmatpush1.msra.mxu0 0.0
    %238 = vmatprep.subr.mxu0 0.0
    %239 = vmatpush1.msra.mxu0 0.0
    %240 = vmatprep.subr.mxu0 0.0
    %241 = vmatpush1.msra.mxu0 0.0
    %242 = vmatprep.subr.mxu0 0.0
    %243 = vmatpush1.msra.mxu0 0.0
    %244 = vmatprep.subr.mxu0 0.0
    %245 = vmatpush1.msra.mxu0 0.0
    %246 = vmatprep.subr.mxu0 0.0
    %247 = vmatpush1.msra.mxu0 0.0
    %248 = vmatprep.subr.mxu0 0.0
    %249 = vmatpush1.msra.mxu0 0.0
    %250 = vmatprep.subr.mxu0 0.0
    %251 = vmatpush1.msra.mxu0 0.0
    %252 = vmatprep.subr.mxu0 0.0
    %253 = vmatpush1.msra.mxu0 0.0
    %254 = vmatprep.subr.mxu0 0.0
    %255 = vmatpush1.msra.mxu0 0.0
    %256 = vmatprep.subr.mxu0 0.0
    %257 = vmatpush1.msra.mxu0 0.0
    %258 = vmatprep.subr.mxu0 0.0
    %259 = vmatpush1.msra.mxu0 0.0
    %260 = vmatprep.subr.mxu0 0.0
    %261 = vmatpush1.msra.mxu0 0.0
    %262 = vmatprep.subr.mxu0 0.0
    %263 = vmatpush1.msra.mxu0 0.0
    %264 = vmatprep.subr.mxu0 0.0
    %265 = vmatpush1.msra.mxu0 0.0
    %266 = vmatprep.subr.mxu0 0.0
    %267 = vmatpush1.msra.mxu0 0.0
    %268 = vmatprep.subr.mxu0 0.0
    %269 = vmatpush1.msra.mxu0 0.0
    %270 = vmatprep.subr.mxu0 0.0
    %271 = vmatpush1.msra.mxu0 0.0
    %272 = vmatprep.subr.mxu0 0.0
    %273 = vmatpush1.msra.mxu0 0.0
    %274 = vmatprep.subr.mxu0 0.0
    %275 = vmatpush1.msra.mxu0 0.0
    %276 = vmatprep.subr.mxu0 0.0
    %277 = vmatpush1.msra.mxu0 0.0
    %278 = vmatprep.subr.mxu0 0.0
    %279 = vmatpush1.msra.mxu0 0.0
    %280 = vmatprep.mubr.f32.mxu0 0.0
    %281 = vmatmul.mubr.f32.gmra.mrb[0].mxu0 %v40
    %v282 = vpop.f32.mrb[0].mxu0
    %v283 = vadd.f32 0.0, %v282
    %v284 = vpop.f32.mrb[0].mxu0
    %v285 = vadd.f32 0.0, %v284
    %286 = vmatprep.mubr.f32.mxu0 0.0
    %287 = vmatmul.mubr.f32.gmra.mrb[0].mxu0 %v43
    %v288 = vpop.f32.mrb[0].mxu0
    %v289 = vadd.f32 0.0, %v288
    %v290 = vpop.f32.mrb[0].mxu0
    %v291 = vadd.f32 0.0, %v290
    %292 = vdwg.mxu0
    %v293 = vmul.f32 %v117, %v117
    %v294 = vmul.f32 %v119, %v119
    %v295 = vmul.f32 %v200, %v200
    %v296 = vmul.f32 %v202, %v202
    %v297 = vadd.f32 %v293, %v295
    %v298 = vadd.f32 %v294, %v296
    %v299 = vmul.f32 %v283, %v283
    %v300 = vmul.f32 %v285, %v285
    %v301 = vadd.f32 %v297, %v299
    %v302 = vadd.f32 %v298, %v300
    %v303 = vrsqrt.pop %v301
    %v304 = vmul.f32 %v301, %v303
    %vm305 = vcmp.eq.f32.partialorder %v301, inf
    %v306 = vsel %vm305, %v301, %v304
    %vm307 = vcmp.eq.f32.partialorder %v301, 0.0
    %v308 = vand.u32 %v301, 2147483648
    %v309 = vsel %vm307, %v308, %v306
    %v310 = vrsqrt.pop %v302
    %v311 = vmul.f32 %v302, %v310
    %vm312 = vcmp.eq.f32.partialorder %v302, inf
    %v313 = vsel %vm312, %v302, %v311
    %vm314 = vcmp.eq.f32.partialorder %v302, 0.0
    %v315 = vand.u32 %v302, 2147483648
    %v316 = vsel %vm314, %v315, %v313
    %v317 = vadd.f32 %v309, 1e-06
    %v318 = vadd.f32 %v316, 1e-06
    %v319 = vadd.f32 %v317, %v318
    %320 = vadd.xlane.f32.xlu0 %v319
    %v321 = vpop.xlane.xlu0 %320
    %v322 = vrcp.pop 256.0
    %v323 = vmul.f32 %v321, %v322
    %v324 = vsub.f32 %v317, %v323
    %v325 = vsub.f32 %v318, %v323
    %v326 = vmul.f32 %v324, %v324
    %v327 = vmul.f32 %v325, %v325
    %v328 = vadd.f32 %v326, %v327
    %329 = vadd.xlane.f32.xlu0 %v328
    %v330 = vpop.xlane.xlu0 %329
    %v331 = vmul.f32 %v330, %v322
    %v332 = vadd.f32 %v331, 1e-05
    %v333 = vrsqrt.pop %v332
    %v334 = vmul.f32 %v324, %v333
    %v335 = vmul.f32 %v325, %v333
    %v336 = vrcp.pop %v317
    %v337 = vrcp.pop %v318
    %v338 = vmul.f32 %v334, %v336
    %v339 = vmul.f32 %v335, %v337
    %v340 = vmul.f32 %v117, %v338
    %v341 = vmul.f32 %v119, %v339
    %v342 = vmul.f32 %v200, %v338
    %v343 = vmul.f32 %v202, %v339
    %v344 = vmul.f32 %v283, %v338
    %v345 = vmul.f32 %v285, %v339
    %v346 = vmul.f32 %v340, %v123
    %v347 = vmul.f32 %v341, %v125
    %v348 = vmul.f32 %v342, %v206
    %v349 = vmul.f32 %v343, %v208
    %v350 = vadd.f32 %v346, %v348
    %v351 = vadd.f32 %v347, %v349
    %v352 = vmul.f32 %v344, %v289
    %v353 = vmul.f32 %v345, %v291
    %v354 = vadd.f32 %v350, %v352
    %v355 = vadd.f32 %v351, %v353
    %v356 = vmul.f32 %v123, %v123
    %v357 = vmul.f32 %v125, %v125
    %v358 = vmul.f32 %v206, %v206
    %v359 = vmul.f32 %v208, %v208
    %v360 = vadd.f32 %v356, %v358
    %v361 = vadd.f32 %v357, %v359
    %v362 = vmul.f32 %v289, %v289
    %v363 = vmul.f32 %v291, %v291
    %v364 = vadd.f32 %v360, %v362
    %v365 = vadd.f32 %v361, %v363
    %v366 = vadd.f32 %v364, 1e-06
    %v367 = vadd.f32 %v365, 1e-06
    %v368 = vrcp.pop %v366
    %v369 = vrcp.pop %v367
    %v370 = vmul.f32 %v354, %v368
    %v371 = vmul.f32 %v355, %v369
    %vm372 = vcmp.ge.f32.partialorder %v354, 0.0
    %vm373 = vcmp.ge.f32.partialorder %v355, 0.0
    %v374 = vmul.f32 %v370, %v123
    %v375 = vmul.f32 %v371, %v125
    %v376 = vsub.f32 %v340, %v374
    %v377 = vsub.f32 %v341, %v375
    %v378 = vsel %vm372, %v340, %v376
    %v379 = vsel %vm373, %v341, %v377
    %v380 = vmul.f32 %v370, %v206
    %v381 = vmul.f32 %v371, %v208
    %v382 = vsub.f32 %v342, %v380
    %v383 = vsub.f32 %v343, %v381
    %v384 = vsel %vm372, %v342, %v382
    %v385 = vsel %vm373, %v343, %v383
    %v386 = vmul.f32 %v370, %v289
    %v387 = vmul.f32 %v371, %v291
    %v388 = vsub.f32 %v344, %v386
    %v389 = vsub.f32 %v345, %v387
    %v390 = vsel %vm372, %v344, %v388
    %v391 = vsel %vm373, %v345, %v389
    %v392 = vld [vmem:[%s2] sm:$0x3]
    %vm393 = vcmask 64512
    %v395 = vsel %vm393, %v392, 0
    %397 = vmatprep.subr.mxu0 %v379
    %398 = vmatpush1.msra.mxu0 %v378
    %399 = vmatprep.subr.mxu0 0.0
    %400 = vmatpush1.msra.mxu0 0.0
    %401 = vmatprep.subr.mxu0 0.0
    %402 = vmatpush1.msra.mxu0 0.0
    %403 = vmatprep.subr.mxu0 0.0
    %404 = vmatpush1.msra.mxu0 0.0
    %405 = vmatprep.subr.mxu0 0.0
    %406 = vmatpush1.msra.mxu0 0.0
    %407 = vmatprep.subr.mxu0 0.0
    %408 = vmatpush1.msra.mxu0 0.0
    %409 = vmatprep.subr.mxu0 0.0
    %410 = vmatpush1.msra.mxu0 0.0
    %411 = vmatprep.subr.mxu0 0.0
    %412 = vmatpush1.msra.mxu0 0.0
    %413 = vmatprep.subr.mxu0 0.0
    %414 = vmatpush1.msra.mxu0 0.0
    %415 = vmatprep.subr.mxu0 0.0
    %416 = vmatpush1.msra.mxu0 0.0
    %417 = vmatprep.subr.mxu0 0.0
    %418 = vmatpush1.msra.mxu0 0.0
    %419 = vmatprep.subr.mxu0 0.0
    %420 = vmatpush1.msra.mxu0 0.0
    %421 = vmatprep.subr.mxu0 0.0
    %422 = vmatpush1.msra.mxu0 0.0
    %423 = vmatprep.subr.mxu0 0.0
    %424 = vmatpush1.msra.mxu0 0.0
    %425 = vmatprep.subr.mxu0 0.0
    %426 = vmatpush1.msra.mxu0 0.0
    %427 = vmatprep.subr.mxu0 0.0
    %428 = vmatpush1.msra.mxu0 0.0
    %429 = vmatprep.subr.mxu0 0.0
    %430 = vmatpush1.msra.mxu0 0.0
    %431 = vmatprep.subr.mxu0 0.0
    %432 = vmatpush1.msra.mxu0 0.0
    %433 = vmatprep.subr.mxu0 0.0
    %434 = vmatpush1.msra.mxu0 0.0
    %435 = vmatprep.subr.mxu0 0.0
    %436 = vmatpush1.msra.mxu0 0.0
    %437 = vmatprep.subr.mxu0 0.0
    %438 = vmatpush1.msra.mxu0 0.0
    %439 = vmatprep.subr.mxu0 0.0
    %440 = vmatpush1.msra.mxu0 0.0
    %441 = vmatprep.subr.mxu0 0.0
    %442 = vmatpush1.msra.mxu0 0.0
    %443 = vmatprep.subr.mxu0 0.0
    %444 = vmatpush1.msra.mxu0 0.0
    %445 = vmatprep.subr.mxu0 0.0
    %446 = vmatpush1.msra.mxu0 0.0
    %447 = vmatprep.subr.mxu0 0.0
    %448 = vmatpush1.msra.mxu0 0.0
    %449 = vmatprep.subr.mxu0 0.0
    %450 = vmatpush1.msra.mxu0 0.0
    %451 = vmatprep.subr.mxu0 0.0
    %452 = vmatpush1.msra.mxu0 0.0
    %453 = vmatprep.subr.mxu0 0.0
    %454 = vmatpush1.msra.mxu0 0.0
    %455 = vmatprep.subr.mxu0 0.0
    %456 = vmatpush1.msra.mxu0 0.0
    %457 = vmatprep.subr.mxu0 0.0
    %458 = vmatpush1.msra.mxu0 0.0
    %459 = vmatprep.subr.mxu0 0.0
    %460 = vmatpush1.msra.mxu0 0.0
    %461 = vmatprep.mubr.f32.mxu0 0.0
    %462 = vmatmul.mubr.f32.gmra.mrb[0].mxu0 %v395
    %v463 = vpop.f32.mrb[0].mxu0
    %v464 = vadd.f32 0.0, %v463
    %v465 = vpop.f32.mrb[0].mxu0
    %v466 = vadd.f32 0.0, %v465
    %467 = vdwg.mxu0
    %468 = vmatprep.subr.mxu0 %v385
    %469 = vmatpush1.msra.mxu0 %v384
    %470 = vmatprep.subr.mxu0 0.0
    %471 = vmatpush1.msra.mxu0 0.0
    %472 = vmatprep.subr.mxu0 0.0
    %473 = vmatpush1.msra.mxu0 0.0
    %474 = vmatprep.subr.mxu0 0.0
    %475 = vmatpush1.msra.mxu0 0.0
    %476 = vmatprep.subr.mxu0 0.0
    %477 = vmatpush1.msra.mxu0 0.0
    %478 = vmatprep.subr.mxu0 0.0
    %479 = vmatpush1.msra.mxu0 0.0
    %480 = vmatprep.subr.mxu0 0.0
    %481 = vmatpush1.msra.mxu0 0.0
    %482 = vmatprep.subr.mxu0 0.0
    %483 = vmatpush1.msra.mxu0 0.0
    %484 = vmatprep.subr.mxu0 0.0
    %485 = vmatpush1.msra.mxu0 0.0
    %486 = vmatprep.subr.mxu0 0.0
    %487 = vmatpush1.msra.mxu0 0.0
    %488 = vmatprep.subr.mxu0 0.0
    %489 = vmatpush1.msra.mxu0 0.0
    %490 = vmatprep.subr.mxu0 0.0
    %491 = vmatpush1.msra.mxu0 0.0
    %492 = vmatprep.subr.mxu0 0.0
    %493 = vmatpush1.msra.mxu0 0.0
    %494 = vmatprep.subr.mxu0 0.0
    %495 = vmatpush1.msra.mxu0 0.0
    %496 = vmatprep.subr.mxu0 0.0
    %497 = vmatpush1.msra.mxu0 0.0
    %498 = vmatprep.subr.mxu0 0.0
    %499 = vmatpush1.msra.mxu0 0.0
    %500 = vmatprep.subr.mxu0 0.0
    %501 = vmatpush1.msra.mxu0 0.0
    %502 = vmatprep.subr.mxu0 0.0
    %503 = vmatpush1.msra.mxu0 0.0
    %504 = vmatprep.subr.mxu0 0.0
    %505 = vmatpush1.msra.mxu0 0.0
    %506 = vmatprep.subr.mxu0 0.0
    %507 = vmatpush1.msra.mxu0 0.0
    %508 = vmatprep.subr.mxu0 0.0
    %509 = vmatpush1.msra.mxu0 0.0
    %510 = vmatprep.subr.mxu0 0.0
    %511 = vmatpush1.msra.mxu0 0.0
    %512 = vmatprep.subr.mxu0 0.0
    %513 = vmatpush1.msra.mxu0 0.0
    %514 = vmatprep.subr.mxu0 0.0
    %515 = vmatpush1.msra.mxu0 0.0
    %516 = vmatprep.subr.mxu0 0.0
    %517 = vmatpush1.msra.mxu0 0.0
    %518 = vmatprep.subr.mxu0 0.0
    %519 = vmatpush1.msra.mxu0 0.0
    %520 = vmatprep.subr.mxu0 0.0
    %521 = vmatpush1.msra.mxu0 0.0
    %522 = vmatprep.subr.mxu0 0.0
    %523 = vmatpush1.msra.mxu0 0.0
    %524 = vmatprep.subr.mxu0 0.0
    %525 = vmatpush1.msra.mxu0 0.0
    %526 = vmatprep.subr.mxu0 0.0
    %527 = vmatpush1.msra.mxu0 0.0
    %528 = vmatprep.subr.mxu0 0.0
    %529 = vmatpush1.msra.mxu0 0.0
    %530 = vmatprep.subr.mxu0 0.0
    %531 = vmatpush1.msra.mxu0 0.0
    %532 = vmatprep.mubr.f32.mxu0 0.0
    %533 = vmatmul.mubr.f32.gmra.mrb[0].mxu0 %v395
    %v534 = vpop.f32.mrb[0].mxu0
    %v535 = vadd.f32 0.0, %v534
    %v536 = vpop.f32.mrb[0].mxu0
    %v537 = vadd.f32 0.0, %v536
    %538 = vdwg.mxu0
    %539 = vmatprep.subr.mxu0 %v391
    %540 = vmatpush1.msra.mxu0 %v390
    %541 = vmatprep.subr.mxu0 0.0
    %542 = vmatpush1.msra.mxu0 0.0
    %543 = vmatprep.subr.mxu0 0.0
    %544 = vmatpush1.msra.mxu0 0.0
    %545 = vmatprep.subr.mxu0 0.0
    %546 = vmatpush1.msra.mxu0 0.0
    %547 = vmatprep.subr.mxu0 0.0
    %548 = vmatpush1.msra.mxu0 0.0
    %549 = vmatprep.subr.mxu0 0.0
    %550 = vmatpush1.msra.mxu0 0.0
    %551 = vmatprep.subr.mxu0 0.0
    %552 = vmatpush1.msra.mxu0 0.0
    %553 = vmatprep.subr.mxu0 0.0
    %554 = vmatpush1.msra.mxu0 0.0
    %555 = vmatprep.subr.mxu0 0.0
    %556 = vmatpush1.msra.mxu0 0.0
    %557 = vmatprep.subr.mxu0 0.0
    %558 = vmatpush1.msra.mxu0 0.0
    %559 = vmatprep.subr.mxu0 0.0
    %560 = vmatpush1.msra.mxu0 0.0
    %561 = vmatprep.subr.mxu0 0.0
    %562 = vmatpush1.msra.mxu0 0.0
    %563 = vmatprep.subr.mxu0 0.0
    %564 = vmatpush1.msra.mxu0 0.0
    %565 = vmatprep.subr.mxu0 0.0
    %566 = vmatpush1.msra.mxu0 0.0
    %567 = vmatprep.subr.mxu0 0.0
    %568 = vmatpush1.msra.mxu0 0.0
    %569 = vmatprep.subr.mxu0 0.0
    %570 = vmatpush1.msra.mxu0 0.0
    %571 = vmatprep.subr.mxu0 0.0
    %572 = vmatpush1.msra.mxu0 0.0
    %573 = vmatprep.subr.mxu0 0.0
    %574 = vmatpush1.msra.mxu0 0.0
    %575 = vmatprep.subr.mxu0 0.0
    %576 = vmatpush1.msra.mxu0 0.0
    %577 = vmatprep.subr.mxu0 0.0
    %578 = vmatpush1.msra.mxu0 0.0
    %579 = vmatprep.subr.mxu0 0.0
    %580 = vmatpush1.msra.mxu0 0.0
    %581 = vmatprep.subr.mxu0 0.0
    %582 = vmatpush1.msra.mxu0 0.0
    %583 = vmatprep.subr.mxu0 0.0
    %584 = vmatpush1.msra.mxu0 0.0
    %585 = vmatprep.subr.mxu0 0.0
    %586 = vmatpush1.msra.mxu0 0.0
    %587 = vmatprep.subr.mxu0 0.0
    %588 = vmatpush1.msra.mxu0 0.0
    %589 = vmatprep.subr.mxu0 0.0
    %590 = vmatpush1.msra.mxu0 0.0
    %591 = vmatprep.subr.mxu0 0.0
    %592 = vmatpush1.msra.mxu0 0.0
    %593 = vmatprep.subr.mxu0 0.0
    %594 = vmatpush1.msra.mxu0 0.0
    %595 = vmatprep.subr.mxu0 0.0
    %596 = vmatpush1.msra.mxu0 0.0
    %597 = vmatprep.subr.mxu0 0.0
    %598 = vmatpush1.msra.mxu0 0.0
    %599 = vmatprep.subr.mxu0 0.0
    %600 = vmatpush1.msra.mxu0 0.0
    %601 = vmatprep.subr.mxu0 0.0
    %602 = vmatpush1.msra.mxu0 0.0
    %603 = vmatprep.mubr.f32.mxu0 0.0
    %604 = vmatmul.mubr.f32.gmra.mrb[0].mxu0 %v395
    %v605 = vpop.f32.mrb[0].mxu0
    %v606 = vadd.f32 0.0, %v605
    %v607 = vpop.f32.mrb[0].mxu0
    %v608 = vadd.f32 0.0, %v607
    %609 = vdwg.mxu0
    %v610 = vmul.f32 %v464, %v464
    %v611 = vmul.f32 %v466, %v466
    %v612 = vmul.f32 %v535, %v535
    %v613 = vmul.f32 %v537, %v537
    %v614 = vadd.f32 %v610, %v612
    %v615 = vadd.f32 %v611, %v613
    %v616 = vmul.f32 %v606, %v606
    %v617 = vmul.f32 %v608, %v608
    %v618 = vadd.f32 %v614, %v616
    %v619 = vadd.f32 %v615, %v617
    %v620 = vrsqrt.pop %v618
    %v621 = vmul.f32 %v618, %v620
    %vm622 = vcmp.eq.f32.partialorder %v618, inf
    %v623 = vsel %vm622, %v618, %v621
    %vm624 = vcmp.eq.f32.partialorder %v618, 0.0
    %v625 = vand.u32 %v618, 2147483648
    %v626 = vsel %vm624, %v625, %v623
    %v627 = vrsqrt.pop %v619
    %v628 = vmul.f32 %v619, %v627
    %vm629 = vcmp.eq.f32.partialorder %v619, inf
    %v630 = vsel %vm629, %v619, %v628
    %vm631 = vcmp.eq.f32.partialorder %v619, 0.0
    %v632 = vand.u32 %v619, 2147483648
    %v633 = vsel %vm631, %v632, %v630
    %v634 = vadd.f32 %v626, 1e-06
    %v635 = vadd.f32 %v633, 1e-06
    %vm636 = vcmask 1040384
    %v637 = vsel %vm636, %v634, 0.0
    %v638 = vsel %vm636, %v635, 0.0
    %v639 = vadd.f32 %v637, %v638
    %640 = vadd.xlane.f32.xlu0 %v639
    %v641 = vpop.xlane.xlu0 %640
    %v642 = vmul.f32 %v641, %v322
    %v643 = vsub.f32 %v634, %v642
    %v644 = vsub.f32 %v635, %v642
    %v645 = vmul.f32 %v643, %v643
    %v646 = vmul.f32 %v644, %v644
    %v647 = vsel %vm636, %v645, 0.0
    %v648 = vsel %vm636, %v646, 0.0
    %v649 = vadd.f32 %v647, %v648
    %650 = vadd.xlane.f32.xlu0 %v649
    %v651 = vpop.xlane.xlu0 %650
    %v652 = vmul.f32 %v651, %v322
    %v653 = vadd.f32 %v652, 1e-05
    %v654 = vrsqrt.pop %v653
    %v655 = vmul.f32 %v643, %v654
    %v656 = vmul.f32 %v644, %v654
    %v657 = vrcp.pop %v634
    %v658 = vrcp.pop %v635
    %v659 = vmul.f32 %v655, %v657
    %v660 = vmul.f32 %v656, %v658
    %v661 = vmul.f32 %v464, %v659
    %v662 = vmul.f32 %v466, %v660
    %v663 = vmul.f32 %v535, %v659
    %v664 = vmul.f32 %v537, %v660
    %v665 = vmul.f32 %v606, %v659
    %v666 = vmul.f32 %v608, %v660
    %v669 = vrot.slane %v464, 1
    %v670 = vrot.slane %v466, 1
    %v673 = vmul.f32 %v661, %v669
    %v674 = vmul.f32 %v662, %v670
    %v677 = vrot.slane %v535, 1
    %v678 = vrot.slane %v537, 1
    %v681 = vmul.f32 %v663, %v677
    %v682 = vmul.f32 %v664, %v678
    %v683 = vadd.f32 %v673, %v681
    %v684 = vadd.f32 %v674, %v682
    %v687 = vrot.slane %v606, 1
    %v688 = vrot.slane %v608, 1
    %v691 = vmul.f32 %v665, %v687
    %v692 = vmul.f32 %v666, %v688
    %v693 = vadd.f32 %v683, %v691
    %v694 = vadd.f32 %v684, %v692
    %v695 = vadd.f32 %v618, 1e-06
    %v696 = vadd.f32 %v619, 1e-06
    %v697 = vrcp.pop %v695
    %v698 = vrcp.pop %v696
    %v701 = vrot.slane %v697, 1
    %v702 = vrot.slane %v698, 1
    %v705 = vmul.f32 %v693, %v701
    %v706 = vmul.f32 %v694, %v702
    %vm707 = vcmp.ge.f32.partialorder %v693, 0.0
    %vm708 = vcmp.ge.f32.partialorder %v694, 0.0
    %v709 = vmul.f32 %v705, %v669
    %v710 = vmul.f32 %v706, %v670
    %v711 = vsub.f32 %v661, %v709
    %v712 = vsub.f32 %v662, %v710
    %v713 = vmul.f32 %v661, 0.2
    %v714 = vmul.f32 %v662, 0.2
    %v715 = vmul.f32 %v711, 0.8
    %v716 = vmul.f32 %v712, 0.8
    %v717 = vadd.f32 %v713, %v715
    %v718 = vadd.f32 %v714, %v716
    %v719 = vsel %vm707, %v661, %v717
    %v720 = vsel %vm708, %v662, %v718
    %v721 = vmul.f32 %v705, %v677
    %v722 = vmul.f32 %v706, %v678
    %v723 = vsub.f32 %v663, %v721
    %v724 = vsub.f32 %v664, %v722
    %v725 = vmul.f32 %v663, 0.2
    %v726 = vmul.f32 %v664, 0.2
    %v727 = vmul.f32 %v723, 0.8
    %v728 = vmul.f32 %v724, 0.8
    %v729 = vadd.f32 %v725, %v727
    %v730 = vadd.f32 %v726, %v728
    %v731 = vsel %vm707, %v663, %v729
    %v732 = vsel %vm708, %v664, %v730
    %v733 = vmul.f32 %v705, %v687
    %v734 = vmul.f32 %v706, %v688
    %v735 = vsub.f32 %v665, %v733
    %v736 = vsub.f32 %v666, %v734
    %v737 = vmul.f32 %v665, 0.2
    %v738 = vmul.f32 %v666, 0.2
    %v739 = vmul.f32 %v735, 0.8
    %v740 = vmul.f32 %v736, 0.8
    %v741 = vadd.f32 %v737, %v739
    %v742 = vadd.f32 %v738, %v740
    %v743 = vsel %vm707, %v665, %v741
    %v744 = vsel %vm708, %v666, %v742
    %v747 = vrot.slane %v731, 7
    %v748 = vrot.slane %v732, 7
    %v753 = vrot.slane %v743, 6
    %v754 = vrot.slane %v744, 6
    %v757 = vsel %vm636, %v719, %v747
    %v758 = vsel %vm636, %v720, %v748
    %vm759 = vcmask 1041408
    %v760 = vsel %vm759, %v757, %v753
    %v761 = vsel %vm759, %v758, %v754
    %v764 = vcombine.low %v760, %v761
    %766 = vst [vmem:[#allocation5] sm:$0x77] %v764
    // Predicated region
    $region18: #{tpu_custom_call.1} parent=1 // pred_check
      _
    $region19: #{tpu_custom_call.1} parent=1 // pred_check_branch
      %768 = sbr.rel (0) target = $region21
    $region20: #{tpu_custom_call.1} parent=1 // pred_region
      %s770 = ssub.s32 128, 128
      %771 = vsyncadd [#allocation4], %s770
      %s773 = sshll.u32 [#allocation5], 4
      %s774 = int_to_ptr.vmem [resolvable:$true] %s773
      %776 = dma.vmem_to_hbm [thread:$0]  %s774, 128, %s3, [#allocation4]
    $region21: #{tpu_custom_call.1} parent=1 // pred_fallthru
      _
    // Predicated region
    $region22: #{tpu_custom_call.1} parent=1 // pred_check
      _
    $region23: #{tpu_custom_call.1} parent=1 // pred_check_branch
      %778 = sbr.rel (0) target = $region25
    $region24: #{tpu_custom_call.1} parent=1 // pred_region
      %779 = dma.done [#allocation4], 128
    $region25: #{tpu_custom_call.1} parent=1 // pred_fallthru
      _
    %780 = vsyncpa [#allocation3], 1
    %781 = vsyncpa [#allocation4], 1

</llo_original>
